<compile_context>
chip_gen: v6e
topology: v6e:2x2x1
jax: 0.10.0
libtpu: 0.0.40
codegen_flags: <defaults>
</compile_context>

<pallas_src>
import functools

import jax
import jax.numpy as jnp
from jax.experimental import pallas as pl
from jax.experimental.pallas import tpu as pltpu

EPS = 1e-5  # nn.LayerNorm default eps


def _merge_norm_reduce_kernel(x_ref, w_ref, b_ref, o_ref, *, eps):
    """Fused 2x2 merge + LayerNorm(4C) + Linear(4C -> 2C).

    x_ref : (1, TH, 2, W2, 2C)  input tile; axis 2 = h-parity, last dim packs
                                [w-even channels | w-odd channels]
    w_ref : (4C, 2C)            reduction weight, rows grouped [x0|x2|x1|x3]
                                and pre-scaled by the matching LN gamma
    b_ref : (1, 2C)             beta @ W  (LN beta folded into a linear bias)
    o_ref : (1, TH*W2, 2C)      output tokens, contiguous in (h2, w2) order
    """
    th = x_ref.shape[1]
    w2 = x_ref.shape[3]
    c2 = x_ref.shape[4]
    t = th * w2

    xb = x_ref[0].astype(jnp.float32)             # (TH, 2, W2, 2C), f32 LN math
    # TODO(synk): this flatten is layout-free only when W2 % 8 == 0; for odd
    # Swin resolutions (W2 = 7/14/28) check the bundle dump for a retile copy
    # and pad W2 in the BlockSpec if it shows up.
    x_he = xb[:, 0].reshape(t, c2)                # h-even rows: lanes [x0 | x2]
    x_ho = xb[:, 1].reshape(t, c2)                # h-odd  rows: lanes [x1 | x3]

    # LayerNorm statistics over the full 4C merged vector.
    # 2 lane reductions instead of 4: the extra adds co-issue on the VALU.
    inv_n = 1.0 / (2.0 * c2)                      # 1 / 4C
    s = jnp.sum(x_he + x_ho, axis=-1, keepdims=True)
    sq = jnp.sum(x_he * x_he + x_ho * x_ho, axis=-1, keepdims=True)
    mean = s * inv_n
    var = jnp.maximum(sq * inv_n - mean * mean, 0.0)   # clamp single-pass var
    inv = jax.lax.rsqrt(var + eps)

    # Lane-concat the two halves -> (t, 4C) lhs for a single K=4C MXU pass.
    # Free when 2C is a multiple of 128 lanes (true for Swin dims >= 64).
    xm = jnp.concatenate([x_he, x_ho], axis=-1)
    xn = (xm - mean) * inv                        # gamma/beta folded into W/bias

    wd = w_ref.dtype                              # pass bf16 weights in prod
    acc = jnp.dot(xn.astype(wd), w_ref[...], preferred_element_type=jnp.float32)
    acc = acc + b_ref[...]                        # broadcast (1, 2C) bias
    o_ref[0] = acc.astype(o_ref.dtype)


def _vmem_capacity_bytes():
    """Per-TensorCore VMEM capacity; conservative fallback if unknown."""
    try:
        info = pltpu.get_tpu_info()
        cap = getattr(info, "vmem_capacity_bytes", None)
        if cap:
            return int(cap)
    except Exception:
        pass
    return 64 * 1024 * 1024  # v7x-safe conservative default


def _pick_row_tile(h2, w2, batch, max_tokens, min_steps):
    """Largest h-row tile th (divisor of h2) such that:
       - the output block (th*w2, 2C) keeps sublane alignment (th*w2 % 8 == 0
         unless the block covers the whole slab),
       - the grid keeps >= min_steps steps when the problem allows it
         (v7x: 2 TCs need >= 2 steps each for megacore + pipelining),
       - the token tile fits the VMEM budget (max_tokens)."""
    want_steps = min(min_steps, batch * h2)
    legal = []
    for th in range(1, h2 + 1):
        if h2 % th:
            continue
        if (th * w2) % 8 != 0 and th != h2:
            continue
        if batch * (h2 // th) < want_steps:
            continue
        legal.append(th)
    if not legal:
        legal = [h2]  # whole-slab block is always layout-legal
    fitting = [th for th in legal if th * w2 <= max_tokens]
    return max(fitting) if fitting else min(legal)


def patch_merging(x, w_t, gamma, beta, input_resolution, *, min_grid_steps=4):
    """x: (B, H*W, C) -> (B, (H/2)*(W/2), 2C).   w_t: (4C, 2C) = weight.T"""
    H, W = input_resolution
    B, L, C = x.shape
    assert L == H * W, "input feature has wrong size"
    assert H % 2 == 0 and W % 2 == 0, f"x size ({H}*{W}) are not even."
    H2, W2 = H // 2, W // 2
    L_out = H2 * W2
    C2, C4, Cout = 2 * C, 4 * C, 2 * C

    # Free (metadata-only) reshape: (B, H, W, C) -> (B, H/2, 2, W/2, 2C).
    x4 = x.reshape(B, H2, 2, W2, C2)

    # Merged 4C channel order in PyTorch: [x0(he,we) | x1(ho,we) | x2(he,wo) | x3(ho,wo)].
    # The kernel's lane-concat produces [x0 | x2 | x1 | x3]; regroup weight rows
    # to match and fold the LN affine (gamma into rows, beta into a bias).
    w_g = jnp.concatenate(
        [w_t[0:C], w_t[2 * C:3 * C], w_t[C:2 * C], w_t[3 * C:4 * C]], axis=0)
    g_g = jnp.concatenate(
        [gamma[0:C], gamma[2 * C:3 * C], gamma[C:2 * C], gamma[3 * C:4 * C]])
    w_fused = (g_g[:, None] * w_g).astype(w_t.dtype)                     # (4C, 2C)
    bias = (beta.astype(jnp.float32) @ w_t.astype(jnp.float32)).reshape(1, Cout)

    # --- Generation-aware tile sizing (mem-bound kernel: biggest safe block). ---
    x_item = jnp.dtype(x.dtype).itemsize
    w_item = jnp.dtype(w_fused.dtype).itemsize
    out_item = x_item

    vmem_cap = _vmem_capacity_bytes()
    budget = min(int(vmem_cap * 0.75), 100 * 1024 * 1024)  # ~48 MiB v7x, ~96 MiB v5e/v6e
    fixed = C4 * Cout * w_item + Cout * 4                   # single-buffered weight + bias
    # per-token: double-buffered x + out blocks, plus ~3 f32 copies of the 4C slab.
    per_token = 2 * C4 * x_item + 2 * Cout * out_item + 3 * C4 * 4
    max_tokens = max((budget - fixed) // per_token, W2)

    th = _pick_row_tile(H2, W2, B, max_tokens, min_grid_steps)
    t = th * W2
    n_h = H2 // th

    cost = pl.CostEstimate(
        flops=2 * B * L_out * C4 * Cout,
        transcendentals=0,
        bytes_accessed=(B * L * C * x_item
                        + C4 * Cout * w_item
                        + Cout * 4
                        + B * L_out * Cout * out_item),
    )

    def _build(single_buffer_consts):
        const_kwargs = {}
        if single_buffer_consts:
            # Grid-invariant blocks: no double buffering -> more VMEM for tiles.
            const_kwargs = dict(pipeline_mode=pl.Buffered(1))
        grid_spec = pltpu.PrefetchScalarGridSpec(
            num_scalar_prefetch=0,
            grid=(B, n_h),
            in_specs=[
                pl.BlockSpec((1, th, 2, W2, C2), lambda b, i: (b, i, 0, 0, 0)),
                pl.BlockSpec((C4, Cout), lambda b, i: (0, 0), **const_kwargs),
                pl.BlockSpec((1, Cout), lambda b, i: (0, 0), **const_kwargs),
            ],
            out_specs=pl.BlockSpec((1, t, Cout), lambda b, i: (b, i, 0)),
        )
        return pl.pallas_call(
            functools.partial(_merge_norm_reduce_kernel, eps=EPS),
            out_shape=jax.ShapeDtypeStruct((B, L_out, Cout), x.dtype),
            grid_spec=grid_spec,
            compiler_params=pltpu.CompilerParams(
                dimension_semantics=("parallel", "parallel"),
                vmem_limit_bytes=int(budget),
            ),
            cost_estimate=cost,
        )

    try:
        out = _build(True)(x4, w_fused, bias)
        out = jax.block_until_ready(out)
    except Exception:
        # Older JAX may reject pipeline_mode / Buffered(1); default buffering.
        out = _build(False)(x4, w_fused, bias)
        out = jax.block_until_ready(out)
    return out


def reference(x, w_t, gamma, beta, input_resolution):
    """Plain-JAX reference mirroring the PyTorch PatchMerging forward exactly."""
    H, W = input_resolution
    B, L, C = x.shape
    xr = x.reshape(B, H, W, C)
    x0 = xr[:, 0::2, 0::2, :]
    x1 = xr[:, 1::2, 0::2, :]
    x2 = xr[:, 0::2, 1::2, :]
    x3 = xr[:, 1::2, 1::2, :]
    xc = jnp.concatenate([x0, x1, x2, x3], axis=-1).reshape(B, -1, 4 * C)
    mean = xc.mean(-1, keepdims=True)
    var = ((xc - mean) ** 2).mean(-1, keepdims=True)   # biased var (torch LN)
    xn = (xc - mean) / jnp.sqrt(var + EPS) * gamma + beta
    return jnp.einsum("blk,kd->bld", xn, w_t)          # Linear(4C->2C, no bias)


if __name__ == "__main__":
    B, H, W, C = 2, 16, 16, 64
    L = H * W

    key = jax.random.PRNGKey(0)
    kx, kw, kg, kb = jax.random.split(key, 4)

    x = jax.random.normal(kx, (B, L, C), dtype=jnp.float32)
    # nn.Linear(4C, 2C, bias=False).weight has shape (2C, 4C); store transposed.
    w_t = 0.05 * jax.random.normal(kw, (4 * C, 2 * C), dtype=jnp.float32)
    gamma = 1.0 + 0.1 * jax.random.normal(kg, (4 * C,), dtype=jnp.float32)
    beta = 0.1 * jax.random.normal(kb, (4 * C,), dtype=jnp.float32)

    out = patch_merging(x, w_t, gamma, beta, (H, W))
    out = jax.block_until_ready(out)

    ref = reference(x, w_t, gamma, beta, (H, W))
    assert out.shape == (B, (H // 2) * (W // 2), 2 * C), out.shape
    assert jnp.allclose(out, ref, rtol=2e-2, atol=2e-2), (
        float(jnp.max(jnp.abs(out - ref))))

    print("KERNEL_OK")
</pallas_src>

<mosaic_0001>
module attributes {stable_mosaic.version = 11 : i64} {
  func.func @_merge_norm_reduce_kernel(%arg0: i32, %arg1: i32, %arg2: memref<1x4x2x8x128xf32, #tpu.memory_space<vmem>>, %arg3: memref<256x128xf32, #tpu.memory_space<vmem>>, %arg4: memref<1x128xf32, #tpu.memory_space<vmem>>, %arg5: memref<1x32x128xf32, #tpu.memory_space<vmem>>) attributes {dimension_semantics = [#tpu.dimension_semantics<parallel>, #tpu.dimension_semantics<parallel>], iteration_bounds = array<i64: 2, 2>, scalar_prefetch = 0 : i64, scratch_operands = 0 : i64, tpu.core_type = #tpu.core_type<tc>, window_params = [{transform_indices = @transform_0, window_bounds = array<i64: 1, 4, 2, 8, 128>}, {pipeline_mode = #tpu.pipeline_mode<synchronous>, transform_indices = @transform_1, window_bounds = array<i64: 256, 128>}, {pipeline_mode = #tpu.pipeline_mode<synchronous>, transform_indices = @transform_2, window_bounds = array<i64: 1, 128>}, {transform_indices = @transform_3, window_bounds = array<i64: 1, 32, 128>}]} {
    %c0 = arith.constant 0 : index
    %c0_0 = arith.constant 0 : index
    %c0_1 = arith.constant 0 : index
    %c0_2 = arith.constant 0 : index
    %c0_3 = arith.constant 0 : index
    %0 = vector.load %arg2[%c0, %c0_0, %c0_1, %c0_2, %c0_3] : memref<1x4x2x8x128xf32, #tpu.memory_space<vmem>>, vector<1x4x2x8x128xf32>
    %1 = vector.shape_cast %0 : vector<1x4x2x8x128xf32> to vector<4x2x8x128xf32>
    %2 = vector.extract_strided_slice %1 {offsets = [0, 0, 0, 0], sizes = [4, 1, 8, 128], strides = [1, 1, 1, 1]} : vector<4x2x8x128xf32> to vector<4x1x8x128xf32>
    %3 = vector.shape_cast %2 : vector<4x1x8x128xf32> to vector<4x8x128xf32>
    %4 = vector.shape_cast %3 : vector<4x8x128xf32> to vector<32x128xf32>
    %5 = vector.extract_strided_slice %1 {offsets = [0, 1, 0, 0], sizes = [4, 1, 8, 128], strides = [1, 1, 1, 1]} : vector<4x2x8x128xf32> to vector<4x1x8x128xf32>
    %6 = vector.shape_cast %5 : vector<4x1x8x128xf32> to vector<4x8x128xf32>
    %7 = vector.shape_cast %6 : vector<4x8x128xf32> to vector<32x128xf32>
    %8 = arith.addf %4, %7 : vector<32x128xf32>
    %cst = arith.constant dense<0.000000e+00> : vector<32xf32>
    %9 = vector.multi_reduction <add>, %8, %cst [1] : vector<32x128xf32> to vector<32xf32>
    %10 = vector.shape_cast %9 : vector<32xf32> to vector<32x1xf32>
    %11 = arith.mulf %4, %4 : vector<32x128xf32>
    %12 = arith.mulf %7, %7 : vector<32x128xf32>
    %13 = arith.addf %11, %12 : vector<32x128xf32>
    %cst_4 = arith.constant dense<0.000000e+00> : vector<32xf32>
    %14 = vector.multi_reduction <add>, %13, %cst_4 [1] : vector<32x128xf32> to vector<32xf32>
    %15 = vector.shape_cast %14 : vector<32xf32> to vector<32x1xf32>
    %cst_5 = arith.constant 3.906250e-03 : f32
    %16 = vector.broadcast %cst_5 : f32 to vector<32x1xf32>
    %17 = arith.mulf %10, %16 : vector<32x1xf32>
    %cst_6 = arith.constant 3.906250e-03 : f32
    %18 = vector.broadcast %cst_6 : f32 to vector<32x1xf32>
    %19 = arith.mulf %15, %18 : vector<32x1xf32>
    %20 = arith.mulf %17, %17 : vector<32x1xf32>
    %21 = arith.subf %19, %20 : vector<32x1xf32>
    %cst_7 = arith.constant 0.000000e+00 : f32
    %22 = vector.broadcast %cst_7 : f32 to vector<32x1xf32>
    %23 = arith.maximumf %21, %22 : vector<32x1xf32>
    %cst_8 = arith.constant 9.99999974E-6 : f32
    %24 = vector.broadcast %cst_8 : f32 to vector<32x1xf32>
    %25 = arith.addf %23, %24 : vector<32x1xf32>
    %26 = math.rsqrt %25 : vector<32x1xf32>
    %27 = tpu.concatenate %4, %7 in 1 : vector<32x128xf32>, vector<32x128xf32> -> vector<32x256xf32>
    %28 = vector.broadcast %17 : vector<32x1xf32> to vector<32x256xf32>
    %29 = arith.subf %27, %28 : vector<32x256xf32>
    %30 = vector.broadcast %26 : vector<32x1xf32> to vector<32x256xf32>
    %31 = arith.mulf %29, %30 : vector<32x256xf32>
    %c0_9 = arith.constant 0 : index
    %c0_10 = arith.constant 0 : index
    %32 = vector.load %arg3[%c0_9, %c0_10] : memref<256x128xf32, #tpu.memory_space<vmem>>, vector<256x128xf32>
    %cst_11 = arith.constant dense<0.000000e+00> : vector<32x128xf32>
    %33 = tpu.matmul %31, %32, %cst_11 {dimension_numbers = #tpu.dot_dimension_numbers<[1], [0], [0], [1], [0, 0, 1, 1], [], []>} : vector<32x256xf32>, vector<256x128xf32>, vector<32x128xf32> -> vector<32x128xf32>
    %c0_12 = arith.constant 0 : index
    %c0_13 = arith.constant 0 : index
    %34 = vector.load %arg4[%c0_12, %c0_13] : memref<1x128xf32, #tpu.memory_space<vmem>>, vector<1x128xf32>
    %35 = vector.broadcast %34 : vector<1x128xf32> to vector<32x128xf32>
    %36 = arith.addf %33, %35 : vector<32x128xf32>
    %c0_14 = arith.constant 0 : index
    %c0_15 = arith.constant 0 : index
    %c0_16 = arith.constant 0 : index
    %37 = vector.load %arg5[%c0_14, %c0_15, %c0_16] : memref<1x32x128xf32, #tpu.memory_space<vmem>>, vector<1x32x128xf32>
    %38 = vector.shape_cast %37 : vector<1x32x128xf32> to vector<32x128xf32>
    %39 = vector.shape_cast %36 : vector<32x128xf32> to vector<1x32x128xf32>
    tpu.vector_store %arg5[%c0_14, %c0_15, %c0_16], %39 {strides = array<i32>} : memref<1x32x128xf32, #tpu.memory_space<vmem>>, vector<1x32x128xf32>,
    return
  }
  func.func @transform_0(%arg0: i32, %arg1: i32) -> (i32, i32, i32, i32, i32) {
    %c0_i32 = arith.constant 0 : i32
    %c0_i32_0 = arith.constant 0 : i32
    %c0_i32_1 = arith.constant 0 : i32
    %c0_i32_2 = arith.constant 0 : i32
    return %arg0, %arg1, %c0_i32, %c0_i32_0, %c0_i32_1 : i32, i32, i32, i32, i32
  }
  func.func @transform_1(%arg0: i32, %arg1: i32) -> (i32, i32) {
    %c0_i32 = arith.constant 0 : i32
    %c0_i32_0 = arith.constant 0 : i32
    %c0_i32_1 = arith.constant 0 : i32
    return %c0_i32, %c0_i32_0 : i32, i32
  }
  func.func @transform_2(%arg0: i32, %arg1: i32) -> (i32, i32) {
    %c0_i32 = arith.constant 0 : i32
    %c0_i32_0 = arith.constant 0 : i32
    %c0_i32_1 = arith.constant 0 : i32
    return %c0_i32, %c0_i32_0 : i32, i32
  }
  func.func @transform_3(%arg0: i32, %arg1: i32) -> (i32, i32, i32) {
    %c0_i32 = arith.constant 0 : i32
    %c0_i32_0 = arith.constant 0 : i32
    return %arg0, %arg1, %c0_i32 : i32, i32, i32
  }
}

module attributes {stable_mosaic.version = 11 : i64} {
  func.func @_merge_norm_reduce_kernel(%arg0: i32, %arg1: i32, %arg2: memref<1x4x2x8x128xf32, #tpu.memory_space<vmem>>, %arg3: memref<256x128xf32, #tpu.memory_space<vmem>>, %arg4: memref<1x128xf32, #tpu.memory_space<vmem>>, %arg5: memref<1x32x128xf32, #tpu.memory_space<vmem>>) attributes {dimension_semantics = [#tpu.dimension_semantics<parallel>, #tpu.dimension_semantics<parallel>], iteration_bounds = array<i64: 2, 2>, scalar_prefetch = 0 : i64, scratch_operands = 0 : i64, tpu.core_type = #tpu.core_type<tc>, window_params = [{transform_indices = @transform_0, window_bounds = array<i64: 1, 4, 2, 8, 128>}, {pipeline_mode = #tpu.pipeline_mode<synchronous>, transform_indices = @transform_1, window_bounds = array<i64: 256, 128>}, {pipeline_mode = #tpu.pipeline_mode<synchronous>, transform_indices = @transform_2, window_bounds = array<i64: 1, 128>}, {transform_indices = @transform_3, window_bounds = array<i64: 1, 32, 128>}]} {
    %c0 = arith.constant 0 : index
    %c0_0 = arith.constant 0 : index
    %c0_1 = arith.constant 0 : index
    %c0_2 = arith.constant 0 : index
    %c0_3 = arith.constant 0 : index
    %0 = vector.load %arg2[%c0, %c0_0, %c0_1, %c0_2, %c0_3] : memref<1x4x2x8x128xf32, #tpu.memory_space<vmem>>, vector<1x4x2x8x128xf32>
    %1 = vector.shape_cast %0 : vector<1x4x2x8x128xf32> to vector<4x2x8x128xf32>
    %2 = vector.extract_strided_slice %1 {offsets = [0, 0, 0, 0], sizes = [4, 1, 8, 128], strides = [1, 1, 1, 1]} : vector<4x2x8x128xf32> to vector<4x1x8x128xf32>
    %3 = vector.shape_cast %2 : vector<4x1x8x128xf32> to vector<4x8x128xf32>
    %4 = vector.shape_cast %3 : vector<4x8x128xf32> to vector<32x128xf32>
    %5 = vector.extract_strided_slice %1 {offsets = [0, 1, 0, 0], sizes = [4, 1, 8, 128], strides = [1, 1, 1, 1]} : vector<4x2x8x128xf32> to vector<4x1x8x128xf32>
    %6 = vector.shape_cast %5 : vector<4x1x8x128xf32> to vector<4x8x128xf32>
    %7 = vector.shape_cast %6 : vector<4x8x128xf32> to vector<32x128xf32>
    %8 = arith.addf %4, %7 : vector<32x128xf32>
    %cst = arith.constant dense<0.000000e+00> : vector<32xf32>
    %9 = vector.multi_reduction <add>, %8, %cst [1] : vector<32x128xf32> to vector<32xf32>
    %10 = vector.shape_cast %9 : vector<32xf32> to vector<32x1xf32>
    %11 = arith.mulf %4, %4 : vector<32x128xf32>
    %12 = arith.mulf %7, %7 : vector<32x128xf32>
    %13 = arith.addf %11, %12 : vector<32x128xf32>
    %cst_4 = arith.constant dense<0.000000e+00> : vector<32xf32>
    %14 = vector.multi_reduction <add>, %13, %cst_4 [1] : vector<32x128xf32> to vector<32xf32>
    %15 = vector.shape_cast %14 : vector<32xf32> to vector<32x1xf32>
    %cst_5 = arith.constant 3.906250e-03 : f32
    %16 = vector.broadcast %cst_5 : f32 to vector<32x1xf32>
    %17 = arith.mulf %10, %16 : vector<32x1xf32>
    %cst_6 = arith.constant 3.906250e-03 : f32
    %18 = vector.broadcast %cst_6 : f32 to vector<32x1xf32>
    %19 = arith.mulf %15, %18 : vector<32x1xf32>
    %20 = arith.mulf %17, %17 : vector<32x1xf32>
    %21 = arith.subf %19, %20 : vector<32x1xf32>
    %cst_7 = arith.constant 0.000000e+00 : f32
    %22 = vector.broadcast %cst_7 : f32 to vector<32x1xf32>
    %23 = arith.maximumf %21, %22 : vector<32x1xf32>
    %cst_8 = arith.constant 9.99999974E-6 : f32
    %24 = vector.broadcast %cst_8 : f32 to vector<32x1xf32>
    %25 = arith.addf %23, %24 : vector<32x1xf32>
    %26 = math.rsqrt %25 : vector<32x1xf32>
    %27 = tpu.concatenate %4, %7 in 1 : vector<32x128xf32>, vector<32x128xf32> -> vector<32x256xf32>
    %28 = vector.broadcast %17 : vector<32x1xf32> to vector<32x256xf32>
    %29 = arith.subf %27, %28 : vector<32x256xf32>
    %30 = vector.broadcast %26 : vector<32x1xf32> to vector<32x256xf32>
    %31 = arith.mulf %29, %30 : vector<32x256xf32>
    %c0_9 = arith.constant 0 : index
    %c0_10 = arith.constant 0 : index
    %32 = vector.load %arg3[%c0_9, %c0_10] : memref<256x128xf32, #tpu.memory_space<vmem>>, vector<256x128xf32>
    %cst_11 = arith.constant dense<0.000000e+00> : vector<32x128xf32>
    %33 = tpu.matmul %31, %32, %cst_11 {dimension_numbers = #tpu.dot_dimension_numbers<[1], [0], [0], [1], [0, 0, 1, 1], [], []>} : vector<32x256xf32>, vector<256x128xf32>, vector<32x128xf32> -> vector<32x128xf32>
    %c0_12 = arith.constant 0 : index
    %c0_13 = arith.constant 0 : index
    %34 = vector.load %arg4[%c0_12, %c0_13] : memref<1x128xf32, #tpu.memory_space<vmem>>, vector<1x128xf32>
    %35 = vector.broadcast %34 : vector<1x128xf32> to vector<32x128xf32>
    %36 = arith.addf %33, %35 : vector<32x128xf32>
    %c0_14 = arith.constant 0 : index
    %c0_15 = arith.constant 0 : index
    %c0_16 = arith.constant 0 : index
    %37 = vector.load %arg5[%c0_14, %c0_15, %c0_16] : memref<1x32x128xf32, #tpu.memory_space<vmem>>, vector<1x32x128xf32>
    %38 = vector.shape_cast %37 : vector<1x32x128xf32> to vector<32x128xf32>
    %39 = vector.shape_cast %36 : vector<32x128xf32> to vector<1x32x128xf32>
    tpu.vector_store %arg5[%c0_14, %c0_15, %c0_16], %39 {strides = array<i32>} : memref<1x32x128xf32, #tpu.memory_space<vmem>>, vector<1x32x128xf32>,
    return
  }
  func.func @transform_0(%arg0: i32, %arg1: i32) -> (i32, i32, i32, i32, i32) {
    %c0_i32 = arith.constant 0 : i32
    %c0_i32_0 = arith.constant 0 : i32
    %c0_i32_1 = arith.constant 0 : i32
    %c0_i32_2 = arith.constant 0 : i32
    return %arg0, %arg1, %c0_i32, %c0_i32_0, %c0_i32_1 : i32, i32, i32, i32, i32
  }
  func.func @transform_1(%arg0: i32, %arg1: i32) -> (i32, i32) {
    %c0_i32 = arith.constant 0 : i32
    %c0_i32_0 = arith.constant 0 : i32
    %c0_i32_1 = arith.constant 0 : i32
    return %c0_i32, %c0_i32_0 : i32, i32
  }
  func.func @transform_2(%arg0: i32, %arg1: i32) -> (i32, i32) {
    %c0_i32 = arith.constant 0 : i32
    %c0_i32_0 = arith.constant 0 : i32
    %c0_i32_1 = arith.constant 0 : i32
    return %c0_i32, %c0_i32_0 : i32, i32
  }
  func.func @transform_3(%arg0: i32, %arg1: i32) -> (i32, i32, i32) {
    %c0_i32 = arith.constant 0 : i32
    %c0_i32_0 = arith.constant 0 : i32
    return %arg0, %arg1, %c0_i32 : i32, i32, i32
  }
}

</mosaic_0001>

<llo_original>
// kernel: tpu_custom_call.1
$region0: #{tpu_custom_call.1}
  #allocation0 [shape = 'u32[]', space=smem, size = 0x4, offset = 0x4, fixed_abs, tag = 'smem constant byte address 0x4 - core index']
  #allocation1 [shape = 'u32[144,128]{1,0:T(1,128)}', space=vmem, size = 0x12000, scoped, tag = 'internal scratch']
  %s0 = inlined_call_operand.hbm [shape: f32[2,8,2,8,128], index: 0, kind: input, shape index: {}]
  %s1 = inlined_call_operand.hbm [shape: f32[256,128], index: 1, kind: input, shape index: {}]
  %s2 = inlined_call_operand.vmem [shape: f32[1,128], index: 2, kind: input, shape index: {}]
  %s3 = inlined_call_operand.hbm [shape: f32[2,64,128], index: 3, kind: output, shape index: {}]
  %s4 = sld [smem:[#allocation0]]
  $region53: #{tpu_custom_call.1} parent=0
    _
  %s6 = ssub.s32 1, %s4
  %s7 = scalar_select 0, %s6, %s4
  $region1: #{tpu_custom_call.1} parent=0
    #allocation2 [shape = 'u8[65536]{0}', space=vmem, size = 0x10000, scoped, tag = 'input window, operand 0']
    #allocation3 [shape = 's32[2]{0}', space=sflag, size = 0x8, scoped, tag = 'scoped memory for tpu_custom_call.1']
    #allocation4 [shape = 's32[2]{0}', space=sflag, size = 0x8, scoped, tag = 'scoped memory for tpu_custom_call.1']
    #allocation5 [shape = 'u8[131072]{0}', space=vmem, size = 0x20000, scoped, tag = 'input window, operand 1, single buffered']
    #allocation6 [shape = 's32[1]{0}', space=sflag, size = 0x4, scoped, tag = 'scoped memory for tpu_custom_call.1']
    #allocation7 [shape = 'u8[32768]{0}', space=vmem, size = 0x8000, scoped, tag = 'output window, operand 0']
    %8 = vsyncpa [#allocation3], 0
    %s9 = scalar_lea.sflag [#allocation3], 1
    %10 = vsyncpa %s9, 0
    %11 = vsyncpa [#allocation6], 0
    %12 = vsyncpa [#allocation4], 0
    %s13 = scalar_lea.sflag [#allocation4], 1
    %14 = vsyncpa %s13, 0
    loop: start=0, step=1, limit=6
    $region2: #{tpu_custom_call.1} parent=1 // loop_pre_header
      _
    $region3: #{tpu_custom_call.1} parent=1 // loop_header
      %s16 = sphi 0, %s20
      %p17 = scmp.ge.s32.totalorder %s16, 6
      %s23 = sphi 0, %s35
      %s24 = sphi 0, %s31
      %s25 = sphi 0, %s23
      %s26 = sphi 0, %s24
      %s27 = sphi 0, %s25
      %s28 = sphi 0, %s26
      %s40 = sphi 0, %s42
      %s43 = sphi 0, %s40
      %s44 = sphi 0, %s43
      %s60 = sphi 0, %s44
      %s64 = sphi 0, %s64
      %s66 = sphi 0, %s64
      %s67 = sphi 0, %s66
      %s81 = sphi 0, %s67
      %s85 = sphi 0, %s85
      %s87 = sphi 0, %s85
      %s88 = sphi 0, %s87
      %s102 = sphi 0, %s88
      %s110 = sphi 0, %s112
      %s113 = sphi 0, %s110
      %s114 = sphi 0, %s113
      %s130 = sphi 0, %s114
    $region4: #{tpu_custom_call.1} parent=1 // loop_header_branch
      %19 = sbr.rel (%p17) target = $region8
    $region5: #{tpu_custom_call.1} parent=1 // loop_body
      %s21 = ssub.s32 %s16, 1
      %s22 = ssub.s32 %s16, 2
      %s29 = sadd.s32 1, %s24
      %p30 = scmp.ge.s32.totalorder %s29, 2
      %s31 = scalar_select %p30, 0, %s29
      %s32 = sadd.s32 1, %s23
      %s33 = scalar_select %p30, %s32, %s23
      %p34 = scmp.ge.s32.totalorder %s33, 2
      %s35 = scalar_select %p34, 0, %s33
      %s36 = ssub.s32 %s23, %s35
      %s37 = ssub.s32 %s24, %s31
      %s38 = sor.u32 %s36, %s37
      %p39 = scmp.eq.s32.totalorder %s38, 0
      %s41 = sadd.s32 %s40, 1
      %s42 = scalar_select %p39, %s40, %s41
      %p45 = pneg %p39
      %p46 = scmp.eq.s32.totalorder %s16, 3
      %p47 = por %p45, %p46
      %p48 = scmp.ne.s32.totalorder %s40, %s43
      %p49 = scmp.eq.s32.totalorder %s16, 0
      %p50 = por %p48, %p49
      %p51 = scmp.ne.s32.totalorder %s40, %s43
      %p52 = scmp.eq.s32.totalorder %s21, 3
      %p53 = por %p51, %p52
      %p54 = scmp.ne.s32.totalorder %s43, %s44
      %p55 = scmp.eq.s32.totalorder %s21, 0
      %p56 = por %p54, %p55
      %p57 = scmp.ne.s32.totalorder %s43, %s44
      %p58 = scmp.eq.s32.totalorder %s22, 3
      %p59 = por %p57, %p58
      %p61 = scmp.ne.s32.totalorder %s44, %s60
      %p62 = scmp.eq.s32.totalorder %s22, 0
      %p63 = por %p61, %p62
      %s65 = sadd.s32 %s64, 1
      %p68 = scmp.eq.s32.totalorder %s16, 3
      %p69 = scmp.ne.s32.totalorder %s64, %s66
      %p70 = scmp.eq.s32.totalorder %s16, 0
      %p71 = por %p69, %p70
      %p72 = scmp.ne.s32.totalorder %s64, %s66
      %p73 = scmp.eq.s32.totalorder %s21, 3
      %p74 = por %p72, %p73
      %p75 = scmp.ne.s32.totalorder %s66, %s67
      %p76 = scmp.eq.s32.totalorder %s21, 0
      %p77 = por %p75, %p76
      %p78 = scmp.ne.s32.totalorder %s66, %s67
      %p79 = scmp.eq.s32.totalorder %s22, 3
      %p80 = por %p78, %p79
      %p82 = scmp.ne.s32.totalorder %s67, %s81
      %p83 = scmp.eq.s32.totalorder %s22, 0
      %p84 = por %p82, %p83
      %s86 = sadd.s32 %s85, 1
      %p89 = scmp.eq.s32.totalorder %s16, 3
      %p90 = scmp.ne.s32.totalorder %s85, %s87
      %p91 = scmp.eq.s32.totalorder %s16, 0
      %p92 = por %p90, %p91
      %p93 = scmp.ne.s32.totalorder %s85, %s87
      %p94 = scmp.eq.s32.totalorder %s21, 3
      %p95 = por %p93, %p94
      %p96 = scmp.ne.s32.totalorder %s87, %s88
      %p97 = scmp.eq.s32.totalorder %s21, 0
      %p98 = por %p96, %p97
      %p99 = scmp.ne.s32.totalorder %s87, %s88
      %p100 = scmp.eq.s32.totalorder %s22, 3
      %p101 = por %p99, %p100
      %p103 = scmp.ne.s32.totalorder %s88, %s102
      %p104 = scmp.eq.s32.totalorder %s22, 0
      %p105 = por %p103, %p104
      %s106 = ssub.s32 %s23, %s35
      %s107 = ssub.s32 %s24, %s31
      %s108 = sor.u32 %s106, %s107
      %p109 = scmp.eq.s32.totalorder %s108, 0
      %s111 = sadd.s32 %s110, 1
      %s112 = scalar_select %p109, %s110, %s111
      %p115 = pneg %p109
      %p116 = scmp.eq.s32.totalorder %s16, 3
      %p117 = por %p115, %p116
      %p118 = scmp.ne.s32.totalorder %s110, %s113
      %p119 = scmp.eq.s32.totalorder %s16, 0
      %p120 = por %p118, %p119
      %p121 = scmp.ne.s32.totalorder %s110, %s113
      %p122 = scmp.eq.s32.totalorder %s21, 3
      %p123 = por %p121, %p122
      %p124 = scmp.ne.s32.totalorder %s113, %s114
      %p125 = scmp.eq.s32.totalorder %s21, 0
      %p126 = por %p124, %p125
      %p127 = scmp.ne.s32.totalorder %s113, %s114
      %p128 = scmp.eq.s32.totalorder %s22, 3
      %p129 = por %p127, %p128
      %p131 = scmp.ne.s32.totalorder %s114, %s130
      %p132 = scmp.eq.s32.totalorder %s22, 0
      %p133 = por %p131, %p132
      %p134 = scmp.le.s32.totalorder 1, %s16
      %p135 = scmp.lt.s32.totalorder %s16, 5
      %p136 = pnand %p134, %p135
      %p137 = pneg %p136
      // Predicated region
      $region9: #{tpu_custom_call.1} parent=5 // pred_check
        _
      $region10: #{tpu_custom_call.1} parent=5 // pred_check_branch
        %139 = sbr.rel (%p136) target = $region12
      $region11: #{tpu_custom_call.1} parent=5 // pred_region
        %s140 = ssub.s32 %s16, 1
        // Predicated region
        $region13: #{tpu_custom_call.1} parent=11 // pred_check
          %p141 = pneg %p77
        $region14: #{tpu_custom_call.1} parent=11 // pred_check_branch
          %143 = sbr.rel (%p141) target = $region16
        $region15: #{tpu_custom_call.1} parent=11 // pred_region
          %s145 = ssub.s32 4096, 4096
          %146 = vsyncadd [#allocation6], %s145
          %s147 = sshll.u32 [#allocation5], 4
          %s148 = int_to_ptr.vmem [resolvable:$true] %s147
          %153 = dma.hbm_to_vmem [thread:$0]  %s1, 4096, %s148, [#allocation6], 128, 128, 8
        $region16: #{tpu_custom_call.1} parent=11 // pred_fallthru
          _
        // Predicated region
        $region17: #{tpu_custom_call.1} parent=11 // pred_check
          %p154 = pneg %p98
        $region18: #{tpu_custom_call.1} parent=11 // pred_check_branch
          %156 = sbr.rel (%p154) target = $region20
        $region19: #{tpu_custom_call.1} parent=11 // pred_region
          _
        $region20: #{tpu_custom_call.1} parent=11 // pred_fallthru
          _
      $region12: #{tpu_custom_call.1} parent=5 // pred_fallthru
        _
      %p157 = scmp.lt.s32.totalorder %s16, 4
      // Predicated region
      $region21: #{tpu_custom_call.1} parent=5 // pred_check
        %p158 = pneg %p157
      $region22: #{tpu_custom_call.1} parent=5 // pred_check_branch
        %160 = sbr.rel (%p158) target = $region24
      $region23: #{tpu_custom_call.1} parent=5 // pred_region
        // Predicated region
        $region25: #{tpu_custom_call.1} parent=23 // pred_check
          %p161 = pneg %p50
        $region26: #{tpu_custom_call.1} parent=23 // pred_check_branch
          %163 = sbr.rel (%p161) target = $region28
        $region27: #{tpu_custom_call.1} parent=23 // pred_region
          %s164 = sand.u32 %s40, 1
          %s165 = scalar_lea.sflag [#allocation3], %s164
          %s166 = sand.u32 %s40, 1
          %s167 = smul.addr %s166, 64
          %s168 = scalar_lea.vmem [#allocation2], %s167
          %s169 = smul.u32 4, %s24
          %s171 = ssub.s32 1024, 1024
          %172 = vsyncadd %s165, %s171
          %s173 = smul.addr %s169, 2
          %s174 = smul.addr %s23, 16
          %s175 = sadd.s32 %s173, %s174
          %s176 = smul.addr %s175, 128
          %s177 = scalar_lea.hbm %s0, %s176
          %s178 = sshll.u32 %s168, 4
          %s179 = int_to_ptr.vmem [resolvable:$true] %s178
          %184 = dma.hbm_to_vmem [thread:$0]  %s177, 1024, %s179, %s165, 128, 128, 8
        $region28: #{tpu_custom_call.1} parent=23 // pred_fallthru
          _
      $region24: #{tpu_custom_call.1} parent=5 // pred_fallthru
        _
      %p185 = scmp.le.s32.totalorder 1, %s16
      %p186 = scmp.lt.s32.totalorder %s16, 5
      %p187 = pnand %p185, %p186
      %p188 = pneg %p187
      // Predicated region
      $region29: #{tpu_custom_call.1} parent=5 // pred_check
        _
      $region30: #{tpu_custom_call.1} parent=5 // pred_check_branch
        %190 = sbr.rel (%p187) target = $region32
      $region31: #{tpu_custom_call.1} parent=5 // pred_region
        %s191 = ssub.s32 %s16, 1
        %s192 = sand.u32 %s43, 1
        %s193 = scalar_lea.sflag [#allocation3], %s192
        %s194 = sand.u32 %s43, 1
        %s195 = smul.addr %s194, 64
        %s196 = scalar_lea.vmem [#allocation2], %s195
        // Predicated region
        $region33: #{tpu_custom_call.1} parent=31 // pred_check
          %p197 = pneg %p56
        $region34: #{tpu_custom_call.1} parent=31 // pred_check_branch
          %199 = sbr.rel (%p197) target = $region36
        $region35: #{tpu_custom_call.1} parent=31 // pred_region
          %200 = dma.done %s193, 1024
        $region36: #{tpu_custom_call.1} parent=31 // pred_fallthru
          _
        // Predicated region
        $region37: #{tpu_custom_call.1} parent=31 // pred_check
          %p201 = pneg %p77
        $region38: #{tpu_custom_call.1} parent=31 // pred_check_branch
          %203 = sbr.rel (%p201) target = $region40
        $region39: #{tpu_custom_call.1} parent=31 // pred_region
          %204 = dma.done [#allocation6], 4096
        $region40: #{tpu_custom_call.1} parent=31 // pred_fallthru
          _
        %s205 = sand.u32 %s43, 1
        %s206 = scalar_lea.sflag [#allocation3], %s205
        %s207 = sand.u32 %s43, 1
        %s208 = smul.addr %s207, 64
        %s209 = scalar_lea.vmem [#allocation2], %s208
        %p210 = pneg %p56
        %p211 = pneg %p53
        %p212 = pneg %p77
        %p213 = pneg %p74
        %p214 = pneg %p98
        %p215 = pneg %p95
        %p216 = pneg %p126
        %p217 = pneg %p123
        %s218 = sand.u32 %s113, 1
        %s219 = scalar_lea.sflag [#allocation4], %s218
        %s220 = sand.u32 %s113, 1
        %s221 = smul.addr %s220, 32
        %s222 = scalar_lea.vmem [#allocation7], %s221
        %s223 = smul.u32 4, %s26
        %s224 = smul.u32 4, %s26
        %v225 = vld [vmem:[%s196] sm:$0xff]
        %v226 = vld [vmem:[%s196 + $0x8] sm:$0xff]
        %v227 = vld [vmem:[%s196 + $0x10] sm:$0xff]
        %v228 = vld [vmem:[%s196 + $0x18] sm:$0xff]
        %v229 = vld [vmem:[%s196 + $0x20] sm:$0xff]
        %v230 = vld [vmem:[%s196 + $0x28] sm:$0xff]
        %v231 = vld [vmem:[%s196 + $0x30] sm:$0xff]
        %v232 = vld [vmem:[%s196 + $0x38] sm:$0xff]
        %v233 = vadd.f32 %v225, %v226
        %v234 = vadd.f32 %v227, %v228
        %v235 = vadd.f32 %v229, %v230
        %v236 = vadd.f32 %v231, %v232
        %237 = vadd.xlane.f32.xlu0 %v233
        %v238 = vpop.xlane.xlu0 %237
        %239 = vadd.xlane.f32.xlu0 %v234
        %v240 = vpop.xlane.xlu0 %239
        %241 = vadd.xlane.f32.xlu0 %v235
        %v242 = vpop.xlane.xlu0 %241
        %243 = vadd.xlane.f32.xlu0 %v236
        %v244 = vpop.xlane.xlu0 %243
        %v245 = vmul.f32 %v225, %v225
        %v246 = vmul.f32 %v227, %v227
        %v247 = vmul.f32 %v229, %v229
        %v248 = vmul.f32 %v231, %v231
        %v249 = vmul.f32 %v226, %v226
        %v250 = vmul.f32 %v228, %v228
        %v251 = vmul.f32 %v230, %v230
        %v252 = vmul.f32 %v232, %v232
        %v253 = vadd.f32 %v245, %v249
        %v254 = vadd.f32 %v246, %v250
        %v255 = vadd.f32 %v247, %v251
        %v256 = vadd.f32 %v248, %v252
        %257 = vadd.xlane.f32.xlu0 %v253
        %v258 = vpop.xlane.xlu0 %257
        %259 = vadd.xlane.f32.xlu0 %v254
        %v260 = vpop.xlane.xlu0 %259
        %261 = vadd.xlane.f32.xlu0 %v255
        %v262 = vpop.xlane.xlu0 %261
        %263 = vadd.xlane.f32.xlu0 %v256
        %v264 = vpop.xlane.xlu0 %263
        %v265 = vmul.f32 %v238, 0.00390625
        %v266 = vmul.f32 %v240, 0.00390625
        %v267 = vmul.f32 %v242, 0.00390625
        %v268 = vmul.f32 %v244, 0.00390625
        %v269 = vmul.f32 %v258, 0.00390625
        %v270 = vmul.f32 %v260, 0.00390625
        %v271 = vmul.f32 %v262, 0.00390625
        %v272 = vmul.f32 %v264, 0.00390625
        %v273 = vmul.f32 %v265, %v265
        %v274 = vmul.f32 %v266, %v266
        %v275 = vmul.f32 %v267, %v267
        %v276 = vmul.f32 %v268, %v268
        %v277 = vsub.f32 %v269, %v273
        %v278 = vsub.f32 %v270, %v274
        %v279 = vsub.f32 %v271, %v275
        %v280 = vsub.f32 %v272, %v276
        %v281 = vmax.f32 %v277, 0.0
        %v282 = vmax.f32 %v278, 0.0
        %v283 = vmax.f32 %v279, 0.0
        %v284 = vmax.f32 %v280, 0.0
        %v285 = vadd.f32 %v281, 1e-05
        %v286 = vadd.f32 %v282, 1e-05
        %v287 = vadd.f32 %v283, 1e-05
        %v288 = vadd.f32 %v284, 1e-05
        %v289 = vrsqrt.pop %v285
        %v290 = vrsqrt.pop %v286
        %v291 = vrsqrt.pop %v287
        %v292 = vrsqrt.pop %v288
        %v293 = vsub.f32 %v225, %v265
        %v294 = vsub.f32 %v226, %v265
        %v295 = vsub.f32 %v227, %v266
        %v296 = vsub.f32 %v228, %v266
        %v297 = vsub.f32 %v229, %v267
        %v298 = vsub.f32 %v230, %v267
        %v299 = vsub.f32 %v231, %v268
        %v300 = vsub.f32 %v232, %v268
        %v301 = vmul.f32 %v293, %v289
        %v302 = vmul.f32 %v294, %v289
        %v303 = vmul.f32 %v295, %v290
        %v304 = vmul.f32 %v296, %v290
        %v305 = vmul.f32 %v297, %v291
        %v306 = vmul.f32 %v298, %v291
        %v307 = vmul.f32 %v299, %v292
        %v308 = vmul.f32 %v300, %v292
        %v309 = vld [vmem:[#allocation5] sm:$0xff]
        %v310 = vld [vmem:[#allocation5 + $0x8] sm:$0xff]
        %v311 = vld [vmem:[#allocation5 + $0x10] sm:$0xff]
        %v312 = vld [vmem:[#allocation5 + $0x18] sm:$0xff]
        %v313 = vld [vmem:[#allocation5 + $0x20] sm:$0xff]
        %v314 = vld [vmem:[#allocation5 + $0x28] sm:$0xff]
        %v315 = vld [vmem:[#allocation5 + $0x30] sm:$0xff]
        %v316 = vld [vmem:[#allocation5 + $0x38] sm:$0xff]
        %v317 = vld [vmem:[#allocation5 + $0x40] sm:$0xff]
        %v318 = vld [vmem:[#allocation5 + $0x48] sm:$0xff]
        %v319 = vld [vmem:[#allocation5 + $0x50] sm:$0xff]
        %v320 = vld [vmem:[#allocation5 + $0x58] sm:$0xff]
        %v321 = vld [vmem:[#allocation5 + $0x60] sm:$0xff]
        %v322 = vld [vmem:[#allocation5 + $0x68] sm:$0xff]
        %v323 = vld [vmem:[#allocation5 + $0x70] sm:$0xff]
        %v324 = vld [vmem:[#allocation5 + $0x78] sm:$0xff]
        %v325 = vld [vmem:[#allocation5 + $0x80] sm:$0xff]
        %v326 = vld [vmem:[#allocation5 + $0x88] sm:$0xff]
        %v327 = vld [vmem:[#allocation5 + $0x90] sm:$0xff]
        %v328 = vld [vmem:[#allocation5 + $0x98] sm:$0xff]
        %v329 = vld [vmem:[#allocation5 + $0xa0] sm:$0xff]
        %v330 = vld [vmem:[#allocation5 + $0xa8] sm:$0xff]
        %v331 = vld [vmem:[#allocation5 + $0xb0] sm:$0xff]
        %v332 = vld [vmem:[#allocation5 + $0xb8] sm:$0xff]
        %v333 = vld [vmem:[#allocation5 + $0xc0] sm:$0xff]
        %v334 = vld [vmem:[#allocation5 + $0xc8] sm:$0xff]
        %v335 = vld [vmem:[#allocation5 + $0xd0] sm:$0xff]
        %v336 = vld [vmem:[#allocation5 + $0xd8] sm:$0xff]
        %v337 = vld [vmem:[#allocation5 + $0xe0] sm:$0xff]
        %v338 = vld [vmem:[#allocation5 + $0xe8] sm:$0xff]
        %v339 = vld [vmem:[#allocation5 + $0xf0] sm:$0xff]
        %v340 = vld [vmem:[#allocation5 + $0xf8] sm:$0xff]
        %v341 = vld [vmem:[%s2] sm:$0x1]
        %v343 = vlaneseq
        %v344 = vshrl.u32 %v343, 7
        %v345 = vsub.s32 0, %v344
        %v346 = vrot.slane %v341, %v345
        %348 = vmatprep.subr.mxu0 0.0
        %349 = vmatpush1.msra.mxu0 %v324
        %350 = vmatprep.subr.mxu0 0.0
        %351 = vmatpush1.msra.mxu0 %v323
        %352 = vmatprep.subr.mxu0 0.0
        %353 = vmatpush1.msra.mxu0 %v322
        %354 = vmatprep.subr.mxu0 0.0
        %355 = vmatpush1.msra.mxu0 %v321
        %356 = vmatprep.subr.mxu0 0.0
        %357 = vmatpush1.msra.mxu0 %v320
        %358 = vmatprep.subr.mxu0 0.0
        %359 = vmatpush1.msra.mxu0 %v319
        %360 = vmatprep.subr.mxu0 0.0
        %361 = vmatpush1.msra.mxu0 %v318
        %362 = vmatprep.subr.mxu0 0.0
        %363 = vmatpush1.msra.mxu0 %v317
        %364 = vmatprep.subr.mxu0 0.0
        %365 = vmatpush1.msra.mxu0 %v316
        %366 = vmatprep.subr.mxu0 0.0
        %367 = vmatpush1.msra.mxu0 %v315
        %368 = vmatprep.subr.mxu0 0.0
        %369 = vmatpush1.msra.mxu0 %v314
        %370 = vmatprep.subr.mxu0 0.0
        %371 = vmatpush1.msra.mxu0 %v313
        %372 = vmatprep.subr.mxu0 0.0
        %373 = vmatpush1.msra.mxu0 %v312
        %374 = vmatprep.subr.mxu0 0.0
        %375 = vmatpush1.msra.mxu0 %v311
        %376 = vmatprep.subr.mxu0 0.0
        %377 = vmatpush1.msra.mxu0 %v310
        %378 = vmatprep.subr.mxu0 0.0
        %379 = vmatpush1.msra.mxu0 %v309
        %380 = vmatprep.subr.mxu0 0.0
        %381 = vmatpush2.msra.mxu0 %v340
        %382 = vmatprep.subr.mxu0 0.0
        %383 = vmatpush2.msra.mxu0 %v339
        %384 = vmatprep.subr.mxu0 0.0
        %385 = vmatpush2.msra.mxu0 %v338
        %386 = vmatprep.subr.mxu0 0.0
        %387 = vmatpush2.msra.mxu0 %v337
        %388 = vmatprep.subr.mxu0 0.0
        %389 = vmatpush2.msra.mxu0 %v336
        %390 = vmatprep.subr.mxu0 0.0
        %391 = vmatpush2.msra.mxu0 %v335
        %392 = vmatprep.subr.mxu0 0.0
        %393 = vmatpush2.msra.mxu0 %v334
        %394 = vmatprep.subr.mxu0 0.0
        %395 = vmatpush2.msra.mxu0 %v333
        %396 = vmatprep.subr.mxu0 0.0
        %397 = vmatpush2.msra.mxu0 %v332
        %398 = vmatprep.subr.mxu0 0.0
        %399 = vmatpush2.msra.mxu0 %v331
        %400 = vmatprep.subr.mxu0 0.0
        %401 = vmatpush2.msra.mxu0 %v330
        %402 = vmatprep.subr.mxu0 0.0
        %403 = vmatpush2.msra.mxu0 %v329
        %404 = vmatprep.subr.mxu0 0.0
        %405 = vmatpush2.msra.mxu0 %v328
        %406 = vmatprep.subr.mxu0 0.0
        %407 = vmatpush2.msra.mxu0 %v327
        %408 = vmatprep.subr.mxu0 0.0
        %409 = vmatpush2.msra.mxu0 %v326
        %410 = vmatprep.subr.mxu0 0.0
        %411 = vmatpush2.msra.mxu0 %v325
        %412 = vmatprep.mubr.f32.mxu0 %v302
        %413 = vmatmul.mubr.f32.gmra.mxu0 %v301
        %v414 = vpop.f32.mrf.mxu0
        %v415 = vadd.f32 %v346, %v414
        %v416 = vpop.f32.mrf.mxu0
        %417 = vmatprep.mubr.f32.mxu0 %v304
        %418 = vmatmul.mubr.f32.gmra.mxu0 %v303
        %v419 = vpop.f32.mrf.mxu0
        %v420 = vadd.f32 %v346, %v419
        %v421 = vpop.f32.mrf.mxu0
        %422 = vmatprep.mubr.f32.mxu0 %v306
        %423 = vmatmul.mubr.f32.gmra.mxu0 %v305
        %v424 = vpop.f32.mrf.mxu0
        %v425 = vadd.f32 %v346, %v424
        %v426 = vpop.f32.mrf.mxu0
        %427 = vmatprep.mubr.f32.mxu0 %v308
        %428 = vmatmul.mubr.f32.gmra.mxu0 %v307
        %v429 = vpop.f32.mrf.mxu0
        %v430 = vadd.f32 %v346, %v429
        %v431 = vpop.f32.mrf.mxu0
        %432 = vdwg.mxu0
        %433 = vst [vmem:[%s222] sm:$0xff] %v415
        %434 = vst [vmem:[%s222 + $0x8] sm:$0xff] %v420
        %435 = vst [vmem:[%s222 + $0x10] sm:$0xff] %v425
        %436 = vst [vmem:[%s222 + $0x18] sm:$0xff] %v430
        %s437 = sand.u32 %s113, 1
        %s438 = scalar_lea.sflag [#allocation4], %s437
        %s439 = sand.u32 %s113, 1
        %s440 = smul.addr %s439, 32
        %s441 = scalar_lea.vmem [#allocation7], %s440
        // Predicated region
        $region41: #{tpu_custom_call.1} parent=31 // pred_check
          %p442 = pneg %p123
        $region42: #{tpu_custom_call.1} parent=31 // pred_check_branch
          %444 = sbr.rel (%p442) target = $region44
        $region43: #{tpu_custom_call.1} parent=31 // pred_region
          %s445 = smul.u32 4, %s26
          %s447 = ssub.s32 512, 512
          %448 = vsyncadd %s438, %s447
          %s449 = smul.addr %s25, 8
          %s450 = sadd.s32 %s445, %s449
          %s451 = smul.addr %s450, 128
          %s452 = scalar_lea.hbm %s3, %s451
          %s453 = sshll.u32 %s441, 4
          %s454 = int_to_ptr.vmem [resolvable:$true] %s453
          %459 = dma.vmem_to_hbm [thread:$0]  %s454, 512, %s452, %s438, 128, 128, 8
        $region44: #{tpu_custom_call.1} parent=31 // pred_fallthru
          _
      $region32: #{tpu_custom_call.1} parent=5 // pred_fallthru
        _
      %p460 = scmp.le.s32.totalorder 2, %s16
      // Predicated region
      $region45: #{tpu_custom_call.1} parent=5 // pred_check
        %p461 = pneg %p460
      $region46: #{tpu_custom_call.1} parent=5 // pred_check_branch
        %463 = sbr.rel (%p461) target = $region48
      $region47: #{tpu_custom_call.1} parent=5 // pred_region
        %s464 = ssub.s32 %s16, 2
        // Predicated region
        $region49: #{tpu_custom_call.1} parent=47 // pred_check
          %p465 = pneg %p129
        $region50: #{tpu_custom_call.1} parent=47 // pred_check_branch
          %467 = sbr.rel (%p465) target = $region52
        $region51: #{tpu_custom_call.1} parent=47 // pred_region
          %s468 = sand.u32 %s114, 1
          %s469 = scalar_lea.sflag [#allocation4], %s468
          %s470 = sand.u32 %s114, 1
          %s471 = smul.addr %s470, 32
          %s472 = scalar_lea.vmem [#allocation7], %s471
          %473 = dma.done %s469, 512
        $region52: #{tpu_custom_call.1} parent=47 // pred_fallthru
          _
      $region48: #{tpu_custom_call.1} parent=5 // pred_fallthru
        _
    $region6: #{tpu_custom_call.1} parent=1 // loop_footer
      %s20 = sadd.s32 1, %s16
    $region7: #{tpu_custom_call.1} parent=1 // loop_footer_branch
      %15 = sbr.rel target = $region3
    $region8: #{tpu_custom_call.1} parent=1 // loop_exit
      _
    %474 = vsyncpa [#allocation3], 1
    %s475 = scalar_lea.sflag [#allocation3], 1
    %476 = vsyncpa %s475, 1
    %477 = vsyncpa [#allocation6], 1
    %478 = vsyncpa [#allocation4], 1
    %s479 = scalar_lea.sflag [#allocation4], 1
    %480 = vsyncpa %s479, 1

// kernel: tpu_custom_call.1
$region0: #{tpu_custom_call.1}
  #allocation0 [shape = 'u32[]', space=smem, size = 0x4, offset = 0x4, fixed_abs, tag = 'smem constant byte address 0x4 - core index']
  #allocation1 [shape = 'u32[144,128]{1,0:T(1,128)}', space=vmem, size = 0x12000, scoped, tag = 'internal scratch']
  %s0 = inlined_call_operand.hbm [shape: f32[2,8,2,8,128], index: 0, kind: input, shape index: {}]
  %s1 = inlined_call_operand.hbm [shape: f32[256,128], index: 1, kind: input, shape index: {}]
  %s2 = inlined_call_operand.vmem [shape: f32[1,128], index: 2, kind: input, shape index: {}]
  %s3 = inlined_call_operand.hbm [shape: f32[2,64,128], index: 3, kind: output, shape index: {}]
  %s4 = sld [smem:[#allocation0]]
  $region53: #{tpu_custom_call.1} parent=0
    _
  %s6 = ssub.s32 1, %s4
  %s7 = scalar_select 0, %s6, %s4
  $region1: #{tpu_custom_call.1} parent=0
    #allocation2 [shape = 'u8[65536]{0}', space=vmem, size = 0x10000, scoped, tag = 'input window, operand 0']
    #allocation3 [shape = 's32[2]{0}', space=sflag, size = 0x8, scoped, tag = 'scoped memory for tpu_custom_call.1']
    #allocation4 [shape = 's32[2]{0}', space=sflag, size = 0x8, scoped, tag = 'scoped memory for tpu_custom_call.1']
    #allocation5 [shape = 'u8[131072]{0}', space=vmem, size = 0x20000, scoped, tag = 'input window, operand 1, single buffered']
    #allocation6 [shape = 's32[1]{0}', space=sflag, size = 0x4, scoped, tag = 'scoped memory for tpu_custom_call.1']
    #allocation7 [shape = 'u8[32768]{0}', space=vmem, size = 0x8000, scoped, tag = 'output window, operand 0']
    %8 = vsyncpa [#allocation3], 0
    %s9 = scalar_lea.sflag [#allocation3], 1
    %10 = vsyncpa %s9, 0
    %11 = vsyncpa [#allocation6], 0
    %12 = vsyncpa [#allocation4], 0
    %s13 = scalar_lea.sflag [#allocation4], 1
    %14 = vsyncpa %s13, 0
    loop: start=0, step=1, limit=6
    $region2: #{tpu_custom_call.1} parent=1 // loop_pre_header
      _
    $region3: #{tpu_custom_call.1} parent=1 // loop_header
      %s16 = sphi 0, %s20
      %p17 = scmp.ge.s32.totalorder %s16, 6
      %s23 = sphi 0, %s35
      %s24 = sphi 0, %s31
      %s25 = sphi 0, %s23
      %s26 = sphi 0, %s24
      %s27 = sphi 0, %s25
      %s28 = sphi 0, %s26
      %s40 = sphi 0, %s42
      %s43 = sphi 0, %s40
      %s44 = sphi 0, %s43
      %s60 = sphi 0, %s44
      %s64 = sphi 0, %s64
      %s66 = sphi 0, %s64
      %s67 = sphi 0, %s66
      %s81 = sphi 0, %s67
      %s85 = sphi 0, %s85
      %s87 = sphi 0, %s85
      %s88 = sphi 0, %s87
      %s102 = sphi 0, %s88
      %s110 = sphi 0, %s112
      %s113 = sphi 0, %s110
      %s114 = sphi 0, %s113
      %s130 = sphi 0, %s114
    $region4: #{tpu_custom_call.1} parent=1 // loop_header_branch
      %19 = sbr.rel (%p17) target = $region8
    $region5: #{tpu_custom_call.1} parent=1 // loop_body
      %s21 = ssub.s32 %s16, 1
      %s22 = ssub.s32 %s16, 2
      %s29 = sadd.s32 1, %s24
      %p30 = scmp.ge.s32.totalorder %s29, 2
      %s31 = scalar_select %p30, 0, %s29
      %s32 = sadd.s32 1, %s23
      %s33 = scalar_select %p30, %s32, %s23
      %p34 = scmp.ge.s32.totalorder %s33, 2
      %s35 = scalar_select %p34, 0, %s33
      %s36 = ssub.s32 %s23, %s35
      %s37 = ssub.s32 %s24, %s31
      %s38 = sor.u32 %s36, %s37
      %p39 = scmp.eq.s32.totalorder %s38, 0
      %s41 = sadd.s32 %s40, 1
      %s42 = scalar_select %p39, %s40, %s41
      %p45 = pneg %p39
      %p46 = scmp.eq.s32.totalorder %s16, 3
      %p47 = por %p45, %p46
      %p48 = scmp.ne.s32.totalorder %s40, %s43
      %p49 = scmp.eq.s32.totalorder %s16, 0
      %p50 = por %p48, %p49
      %p51 = scmp.ne.s32.totalorder %s40, %s43
      %p52 = scmp.eq.s32.totalorder %s21, 3
      %p53 = por %p51, %p52
      %p54 = scmp.ne.s32.totalorder %s43, %s44
      %p55 = scmp.eq.s32.totalorder %s21, 0
      %p56 = por %p54, %p55
      %p57 = scmp.ne.s32.totalorder %s43, %s44
      %p58 = scmp.eq.s32.totalorder %s22, 3
      %p59 = por %p57, %p58
      %p61 = scmp.ne.s32.totalorder %s44, %s60
      %p62 = scmp.eq.s32.totalorder %s22, 0
      %p63 = por %p61, %p62
      %s65 = sadd.s32 %s64, 1
      %p68 = scmp.eq.s32.totalorder %s16, 3
      %p69 = scmp.ne.s32.totalorder %s64, %s66
      %p70 = scmp.eq.s32.totalorder %s16, 0
      %p71 = por %p69, %p70
      %p72 = scmp.ne.s32.totalorder %s64, %s66
      %p73 = scmp.eq.s32.totalorder %s21, 3
      %p74 = por %p72, %p73
      %p75 = scmp.ne.s32.totalorder %s66, %s67
      %p76 = scmp.eq.s32.totalorder %s21, 0
      %p77 = por %p75, %p76
      %p78 = scmp.ne.s32.totalorder %s66, %s67
      %p79 = scmp.eq.s32.totalorder %s22, 3
      %p80 = por %p78, %p79
      %p82 = scmp.ne.s32.totalorder %s67, %s81
      %p83 = scmp.eq.s32.totalorder %s22, 0
      %p84 = por %p82, %p83
      %s86 = sadd.s32 %s85, 1
      %p89 = scmp.eq.s32.totalorder %s16, 3
      %p90 = scmp.ne.s32.totalorder %s85, %s87
      %p91 = scmp.eq.s32.totalorder %s16, 0
      %p92 = por %p90, %p91
      %p93 = scmp.ne.s32.totalorder %s85, %s87
      %p94 = scmp.eq.s32.totalorder %s21, 3
      %p95 = por %p93, %p94
      %p96 = scmp.ne.s32.totalorder %s87, %s88
      %p97 = scmp.eq.s32.totalorder %s21, 0
      %p98 = por %p96, %p97
      %p99 = scmp.ne.s32.totalorder %s87, %s88
      %p100 = scmp.eq.s32.totalorder %s22, 3
      %p101 = por %p99, %p100
      %p103 = scmp.ne.s32.totalorder %s88, %s102
      %p104 = scmp.eq.s32.totalorder %s22, 0
      %p105 = por %p103, %p104
      %s106 = ssub.s32 %s23, %s35
      %s107 = ssub.s32 %s24, %s31
      %s108 = sor.u32 %s106, %s107
      %p109 = scmp.eq.s32.totalorder %s108, 0
      %s111 = sadd.s32 %s110, 1
      %s112 = scalar_select %p109, %s110, %s111
      %p115 = pneg %p109
      %p116 = scmp.eq.s32.totalorder %s16, 3
      %p117 = por %p115, %p116
      %p118 = scmp.ne.s32.totalorder %s110, %s113
      %p119 = scmp.eq.s32.totalorder %s16, 0
      %p120 = por %p118, %p119
      %p121 = scmp.ne.s32.totalorder %s110, %s113
      %p122 = scmp.eq.s32.totalorder %s21, 3
      %p123 = por %p121, %p122
      %p124 = scmp.ne.s32.totalorder %s113, %s114
      %p125 = scmp.eq.s32.totalorder %s21, 0
      %p126 = por %p124, %p125
      %p127 = scmp.ne.s32.totalorder %s113, %s114
      %p128 = scmp.eq.s32.totalorder %s22, 3
      %p129 = por %p127, %p128
      %p131 = scmp.ne.s32.totalorder %s114, %s130
      %p132 = scmp.eq.s32.totalorder %s22, 0
      %p133 = por %p131, %p132
      %p134 = scmp.le.s32.totalorder 1, %s16
      %p135 = scmp.lt.s32.totalorder %s16, 5
      %p136 = pnand %p134, %p135
      %p137 = pneg %p136
      // Predicated region
      $region9: #{tpu_custom_call.1} parent=5 // pred_check
        _
      $region10: #{tpu_custom_call.1} parent=5 // pred_check_branch
        %139 = sbr.rel (%p136) target = $region12
      $region11: #{tpu_custom_call.1} parent=5 // pred_region
        %s140 = ssub.s32 %s16, 1
        // Predicated region
        $region13: #{tpu_custom_call.1} parent=11 // pred_check
          %p141 = pneg %p77
        $region14: #{tpu_custom_call.1} parent=11 // pred_check_branch
          %143 = sbr.rel (%p141) target = $region16
        $region15: #{tpu_custom_call.1} parent=11 // pred_region
          %s145 = ssub.s32 4096, 4096
          %146 = vsyncadd [#allocation6], %s145
          %s147 = sshll.u32 [#allocation5], 4
          %s148 = int_to_ptr.vmem [resolvable:$true] %s147
          %153 = dma.hbm_to_vmem [thread:$0]  %s1, 4096, %s148, [#allocation6], 128, 128, 8
        $region16: #{tpu_custom_call.1} parent=11 // pred_fallthru
          _
        // Predicated region
        $region17: #{tpu_custom_call.1} parent=11 // pred_check
          %p154 = pneg %p98
        $region18: #{tpu_custom_call.1} parent=11 // pred_check_branch
          %156 = sbr.rel (%p154) target = $region20
        $region19: #{tpu_custom_call.1} parent=11 // pred_region
          _
        $region20: #{tpu_custom_call.1} parent=11 // pred_fallthru
          _
      $region12: #{tpu_custom_call.1} parent=5 // pred_fallthru
        _
      %p157 = scmp.lt.s32.totalorder %s16, 4
      // Predicated region
      $region21: #{tpu_custom_call.1} parent=5 // pred_check
        %p158 = pneg %p157
      $region22: #{tpu_custom_call.1} parent=5 // pred_check_branch
        %160 = sbr.rel (%p158) target = $region24
      $region23: #{tpu_custom_call.1} parent=5 // pred_region
        // Predicated region
        $region25: #{tpu_custom_call.1} parent=23 // pred_check
          %p161 = pneg %p50
        $region26: #{tpu_custom_call.1} parent=23 // pred_check_branch
          %163 = sbr.rel (%p161) target = $region28
        $region27: #{tpu_custom_call.1} parent=23 // pred_region
          %s164 = sand.u32 %s40, 1
          %s165 = scalar_lea.sflag [#allocation3], %s164
          %s166 = sand.u32 %s40, 1
          %s167 = smul.addr %s166, 64
          %s168 = scalar_lea.vmem [#allocation2], %s167
          %s169 = smul.u32 4, %s24
          %s171 = ssub.s32 1024, 1024
          %172 = vsyncadd %s165, %s171
          %s173 = smul.addr %s169, 2
          %s174 = smul.addr %s23, 16
          %s175 = sadd.s32 %s173, %s174
          %s176 = smul.addr %s175, 128
          %s177 = scalar_lea.hbm %s0, %s176
          %s178 = sshll.u32 %s168, 4
          %s179 = int_to_ptr.vmem [resolvable:$true] %s178
          %184 = dma.hbm_to_vmem [thread:$0]  %s177, 1024, %s179, %s165, 128, 128, 8
        $region28: #{tpu_custom_call.1} parent=23 // pred_fallthru
          _
      $region24: #{tpu_custom_call.1} parent=5 // pred_fallthru
        _
      %p185 = scmp.le.s32.totalorder 1, %s16
      %p186 = scmp.lt.s32.totalorder %s16, 5
      %p187 = pnand %p185, %p186
      %p188 = pneg %p187
      // Predicated region
      $region29: #{tpu_custom_call.1} parent=5 // pred_check
        _
      $region30: #{tpu_custom_call.1} parent=5 // pred_check_branch
        %190 = sbr.rel (%p187) target = $region32
      $region31: #{tpu_custom_call.1} parent=5 // pred_region
        %s191 = ssub.s32 %s16, 1
        %s192 = sand.u32 %s43, 1
        %s193 = scalar_lea.sflag [#allocation3], %s192
        %s194 = sand.u32 %s43, 1
        %s195 = smul.addr %s194, 64
        %s196 = scalar_lea.vmem [#allocation2], %s195
        // Predicated region
        $region33: #{tpu_custom_call.1} parent=31 // pred_check
          %p197 = pneg %p56
        $region34: #{tpu_custom_call.1} parent=31 // pred_check_branch
          %199 = sbr.rel (%p197) target = $region36
        $region35: #{tpu_custom_call.1} parent=31 // pred_region
          %200 = dma.done %s193, 1024
        $region36: #{tpu_custom_call.1} parent=31 // pred_fallthru
          _
        // Predicated region
        $region37: #{tpu_custom_call.1} parent=31 // pred_check
          %p201 = pneg %p77
        $region38: #{tpu_custom_call.1} parent=31 // pred_check_branch
          %203 = sbr.rel (%p201) target = $region40
        $region39: #{tpu_custom_call.1} parent=31 // pred_region
          %204 = dma.done [#allocation6], 4096
        $region40: #{tpu_custom_call.1} parent=31 // pred_fallthru
          _
        %s205 = sand.u32 %s43, 1
        %s206 = scalar_lea.sflag [#allocation3], %s205
        %s207 = sand.u32 %s43, 1
        %s208 = smul.addr %s207, 64
        %s209 = scalar_lea.vmem [#allocation2], %s208
        %p210 = pneg %p56
        %p211 = pneg %p53
        %p212 = pneg %p77
        %p213 = pneg %p74
        %p214 = pneg %p98
        %p215 = pneg %p95
        %p216 = pneg %p126
        %p217 = pneg %p123
        %s218 = sand.u32 %s113, 1
        %s219 = scalar_lea.sflag [#allocation4], %s218
        %s220 = sand.u32 %s113, 1
        %s221 = smul.addr %s220, 32
        %s222 = scalar_lea.vmem [#allocation7], %s221
        %s223 = smul.u32 4, %s26
        %s224 = smul.u32 4, %s26
        %v225 = vld [vmem:[%s196] sm:$0xff]
        %v226 = vld [vmem:[%s196 + $0x8] sm:$0xff]
        %v227 = vld [vmem:[%s196 + $0x10] sm:$0xff]
        %v228 = vld [vmem:[%s196 + $0x18] sm:$0xff]
        %v229 = vld [vmem:[%s196 + $0x20] sm:$0xff]
        %v230 = vld [vmem:[%s196 + $0x28] sm:$0xff]
        %v231 = vld [vmem:[%s196 + $0x30] sm:$0xff]
        %v232 = vld [vmem:[%s196 + $0x38] sm:$0xff]
        %v233 = vadd.f32 %v225, %v226
        %v234 = vadd.f32 %v227, %v228
        %v235 = vadd.f32 %v229, %v230
        %v236 = vadd.f32 %v231, %v232
        %237 = vadd.xlane.f32.xlu0 %v233
        %v238 = vpop.xlane.xlu0 %237
        %239 = vadd.xlane.f32.xlu0 %v234
        %v240 = vpop.xlane.xlu0 %239
        %241 = vadd.xlane.f32.xlu0 %v235
        %v242 = vpop.xlane.xlu0 %241
        %243 = vadd.xlane.f32.xlu0 %v236
        %v244 = vpop.xlane.xlu0 %243
        %v245 = vmul.f32 %v225, %v225
        %v246 = vmul.f32 %v227, %v227
        %v247 = vmul.f32 %v229, %v229
        %v248 = vmul.f32 %v231, %v231
        %v249 = vmul.f32 %v226, %v226
        %v250 = vmul.f32 %v228, %v228
        %v251 = vmul.f32 %v230, %v230
        %v252 = vmul.f32 %v232, %v232
        %v253 = vadd.f32 %v245, %v249
        %v254 = vadd.f32 %v246, %v250
        %v255 = vadd.f32 %v247, %v251
        %v256 = vadd.f32 %v248, %v252
        %257 = vadd.xlane.f32.xlu0 %v253
        %v258 = vpop.xlane.xlu0 %257
        %259 = vadd.xlane.f32.xlu0 %v254
        %v260 = vpop.xlane.xlu0 %259
        %261 = vadd.xlane.f32.xlu0 %v255
        %v262 = vpop.xlane.xlu0 %261
        %263 = vadd.xlane.f32.xlu0 %v256
        %v264 = vpop.xlane.xlu0 %263
        %v265 = vmul.f32 %v238, 0.00390625
        %v266 = vmul.f32 %v240, 0.00390625
        %v267 = vmul.f32 %v242, 0.00390625
        %v268 = vmul.f32 %v244, 0.00390625
        %v269 = vmul.f32 %v258, 0.00390625
        %v270 = vmul.f32 %v260, 0.00390625
        %v271 = vmul.f32 %v262, 0.00390625
        %v272 = vmul.f32 %v264, 0.00390625
        %v273 = vmul.f32 %v265, %v265
        %v274 = vmul.f32 %v266, %v266
        %v275 = vmul.f32 %v267, %v267
        %v276 = vmul.f32 %v268, %v268
        %v277 = vsub.f32 %v269, %v273
        %v278 = vsub.f32 %v270, %v274
        %v279 = vsub.f32 %v271, %v275
        %v280 = vsub.f32 %v272, %v276
        %v281 = vmax.f32 %v277, 0.0
        %v282 = vmax.f32 %v278, 0.0
        %v283 = vmax.f32 %v279, 0.0
        %v284 = vmax.f32 %v280, 0.0
        %v285 = vadd.f32 %v281, 1e-05
        %v286 = vadd.f32 %v282, 1e-05
        %v287 = vadd.f32 %v283, 1e-05
        %v288 = vadd.f32 %v284, 1e-05
        %v289 = vrsqrt.pop %v285
        %v290 = vrsqrt.pop %v286
        %v291 = vrsqrt.pop %v287
        %v292 = vrsqrt.pop %v288
        %v293 = vsub.f32 %v225, %v265
        %v294 = vsub.f32 %v226, %v265
        %v295 = vsub.f32 %v227, %v266
        %v296 = vsub.f32 %v228, %v266
        %v297 = vsub.f32 %v229, %v267
        %v298 = vsub.f32 %v230, %v267
        %v299 = vsub.f32 %v231, %v268
        %v300 = vsub.f32 %v232, %v268
        %v301 = vmul.f32 %v293, %v289
        %v302 = vmul.f32 %v294, %v289
        %v303 = vmul.f32 %v295, %v290
        %v304 = vmul.f32 %v296, %v290
        %v305 = vmul.f32 %v297, %v291
        %v306 = vmul.f32 %v298, %v291
        %v307 = vmul.f32 %v299, %v292
        %v308 = vmul.f32 %v300, %v292
        %v309 = vld [vmem:[#allocation5] sm:$0xff]
        %v310 = vld [vmem:[#allocation5 + $0x8] sm:$0xff]
        %v311 = vld [vmem:[#allocation5 + $0x10] sm:$0xff]
        %v312 = vld [vmem:[#allocation5 + $0x18] sm:$0xff]
        %v313 = vld [vmem:[#allocation5 + $0x20] sm:$0xff]
        %v314 = vld [vmem:[#allocation5 + $0x28] sm:$0xff]
        %v315 = vld [vmem:[#allocation5 + $0x30] sm:$0xff]
        %v316 = vld [vmem:[#allocation5 + $0x38] sm:$0xff]
        %v317 = vld [vmem:[#allocation5 + $0x40] sm:$0xff]
        %v318 = vld [vmem:[#allocation5 + $0x48] sm:$0xff]
        %v319 = vld [vmem:[#allocation5 + $0x50] sm:$0xff]
        %v320 = vld [vmem:[#allocation5 + $0x58] sm:$0xff]
        %v321 = vld [vmem:[#allocation5 + $0x60] sm:$0xff]
        %v322 = vld [vmem:[#allocation5 + $0x68] sm:$0xff]
        %v323 = vld [vmem:[#allocation5 + $0x70] sm:$0xff]
        %v324 = vld [vmem:[#allocation5 + $0x78] sm:$0xff]
        %v325 = vld [vmem:[#allocation5 + $0x80] sm:$0xff]
        %v326 = vld [vmem:[#allocation5 + $0x88] sm:$0xff]
        %v327 = vld [vmem:[#allocation5 + $0x90] sm:$0xff]
        %v328 = vld [vmem:[#allocation5 + $0x98] sm:$0xff]
        %v329 = vld [vmem:[#allocation5 + $0xa0] sm:$0xff]
        %v330 = vld [vmem:[#allocation5 + $0xa8] sm:$0xff]
        %v331 = vld [vmem:[#allocation5 + $0xb0] sm:$0xff]
        %v332 = vld [vmem:[#allocation5 + $0xb8] sm:$0xff]
        %v333 = vld [vmem:[#allocation5 + $0xc0] sm:$0xff]
        %v334 = vld [vmem:[#allocation5 + $0xc8] sm:$0xff]
        %v335 = vld [vmem:[#allocation5 + $0xd0] sm:$0xff]
        %v336 = vld [vmem:[#allocation5 + $0xd8] sm:$0xff]
        %v337 = vld [vmem:[#allocation5 + $0xe0] sm:$0xff]
        %v338 = vld [vmem:[#allocation5 + $0xe8] sm:$0xff]
        %v339 = vld [vmem:[#allocation5 + $0xf0] sm:$0xff]
        %v340 = vld [vmem:[#allocation5 + $0xf8] sm:$0xff]
        %v341 = vld [vmem:[%s2] sm:$0x1]
        %v343 = vlaneseq
        %v344 = vshrl.u32 %v343, 7
        %v345 = vsub.s32 0, %v344
        %v346 = vrot.slane %v341, %v345
        %348 = vmatprep.subr.mxu0 0.0
        %349 = vmatpush1.msra.mxu0 %v324
        %350 = vmatprep.subr.mxu0 0.0
        %351 = vmatpush1.msra.mxu0 %v323
        %352 = vmatprep.subr.mxu0 0.0
        %353 = vmatpush1.msra.mxu0 %v322
        %354 = vmatprep.subr.mxu0 0.0
        %355 = vmatpush1.msra.mxu0 %v321
        %356 = vmatprep.subr.mxu0 0.0
        %357 = vmatpush1.msra.mxu0 %v320
        %358 = vmatprep.subr.mxu0 0.0
        %359 = vmatpush1.msra.mxu0 %v319
        %360 = vmatprep.subr.mxu0 0.0
        %361 = vmatpush1.msra.mxu0 %v318
        %362 = vmatprep.subr.mxu0 0.0
        %363 = vmatpush1.msra.mxu0 %v317
        %364 = vmatprep.subr.mxu0 0.0
        %365 = vmatpush1.msra.mxu0 %v316
        %366 = vmatprep.subr.mxu0 0.0
        %367 = vmatpush1.msra.mxu0 %v315
        %368 = vmatprep.subr.mxu0 0.0
        %369 = vmatpush1.msra.mxu0 %v314
        %370 = vmatprep.subr.mxu0 0.0
        %371 = vmatpush1.msra.mxu0 %v313
        %372 = vmatprep.subr.mxu0 0.0
        %373 = vmatpush1.msra.mxu0 %v312
        %374 = vmatprep.subr.mxu0 0.0
        %375 = vmatpush1.msra.mxu0 %v311
        %376 = vmatprep.subr.mxu0 0.0
        %377 = vmatpush1.msra.mxu0 %v310
        %378 = vmatprep.subr.mxu0 0.0
        %379 = vmatpush1.msra.mxu0 %v309
        %380 = vmatprep.subr.mxu0 0.0
        %381 = vmatpush2.msra.mxu0 %v340
        %382 = vmatprep.subr.mxu0 0.0
        %383 = vmatpush2.msra.mxu0 %v339
        %384 = vmatprep.subr.mxu0 0.0
        %385 = vmatpush2.msra.mxu0 %v338
        %386 = vmatprep.subr.mxu0 0.0
        %387 = vmatpush2.msra.mxu0 %v337
        %388 = vmatprep.subr.mxu0 0.0
        %389 = vmatpush2.msra.mxu0 %v336
        %390 = vmatprep.subr.mxu0 0.0
        %391 = vmatpush2.msra.mxu0 %v335
        %392 = vmatprep.subr.mxu0 0.0
        %393 = vmatpush2.msra.mxu0 %v334
        %394 = vmatprep.subr.mxu0 0.0
        %395 = vmatpush2.msra.mxu0 %v333
        %396 = vmatprep.subr.mxu0 0.0
        %397 = vmatpush2.msra.mxu0 %v332
        %398 = vmatprep.subr.mxu0 0.0
        %399 = vmatpush2.msra.mxu0 %v331
        %400 = vmatprep.subr.mxu0 0.0
        %401 = vmatpush2.msra.mxu0 %v330
        %402 = vmatprep.subr.mxu0 0.0
        %403 = vmatpush2.msra.mxu0 %v329
        %404 = vmatprep.subr.mxu0 0.0
        %405 = vmatpush2.msra.mxu0 %v328
        %406 = vmatprep.subr.mxu0 0.0
        %407 = vmatpush2.msra.mxu0 %v327
        %408 = vmatprep.subr.mxu0 0.0
        %409 = vmatpush2.msra.mxu0 %v326
        %410 = vmatprep.subr.mxu0 0.0
        %411 = vmatpush2.msra.mxu0 %v325
        %412 = vmatprep.mubr.f32.mxu0 %v302
        %413 = vmatmul.mubr.f32.gmra.mxu0 %v301
        %v414 = vpop.f32.mrf.mxu0
        %v415 = vadd.f32 %v346, %v414
        %v416 = vpop.f32.mrf.mxu0
        %417 = vmatprep.mubr.f32.mxu0 %v304
        %418 = vmatmul.mubr.f32.gmra.mxu0 %v303
        %v419 = vpop.f32.mrf.mxu0
        %v420 = vadd.f32 %v346, %v419
        %v421 = vpop.f32.mrf.mxu0
        %422 = vmatprep.mubr.f32.mxu0 %v306
        %423 = vmatmul.mubr.f32.gmra.mxu0 %v305
        %v424 = vpop.f32.mrf.mxu0
        %v425 = vadd.f32 %v346, %v424
        %v426 = vpop.f32.mrf.mxu0
        %427 = vmatprep.mubr.f32.mxu0 %v308
        %428 = vmatmul.mubr.f32.gmra.mxu0 %v307
        %v429 = vpop.f32.mrf.mxu0
        %v430 = vadd.f32 %v346, %v429
        %v431 = vpop.f32.mrf.mxu0
        %432 = vdwg.mxu0
        %433 = vst [vmem:[%s222] sm:$0xff] %v415
        %434 = vst [vmem:[%s222 + $0x8] sm:$0xff] %v420
        %435 = vst [vmem:[%s222 + $0x10] sm:$0xff] %v425
        %436 = vst [vmem:[%s222 + $0x18] sm:$0xff] %v430
        %s437 = sand.u32 %s113, 1
        %s438 = scalar_lea.sflag [#allocation4], %s437
        %s439 = sand.u32 %s113, 1
        %s440 = smul.addr %s439, 32
        %s441 = scalar_lea.vmem [#allocation7], %s440
        // Predicated region
        $region41: #{tpu_custom_call.1} parent=31 // pred_check
          %p442 = pneg %p123
        $region42: #{tpu_custom_call.1} parent=31 // pred_check_branch
          %444 = sbr.rel (%p442) target = $region44
        $region43: #{tpu_custom_call.1} parent=31 // pred_region
          %s445 = smul.u32 4, %s26
          %s447 = ssub.s32 512, 512
          %448 = vsyncadd %s438, %s447
          %s449 = smul.addr %s25, 8
          %s450 = sadd.s32 %s445, %s449
          %s451 = smul.addr %s450, 128
          %s452 = scalar_lea.hbm %s3, %s451
          %s453 = sshll.u32 %s441, 4
          %s454 = int_to_ptr.vmem [resolvable:$true] %s453
          %459 = dma.vmem_to_hbm [thread:$0]  %s454, 512, %s452, %s438, 128, 128, 8
        $region44: #{tpu_custom_call.1} parent=31 // pred_fallthru
          _
      $region32: #{tpu_custom_call.1} parent=5 // pred_fallthru
        _
      %p460 = scmp.le.s32.totalorder 2, %s16
      // Predicated region
      $region45: #{tpu_custom_call.1} parent=5 // pred_check
        %p461 = pneg %p460
      $region46: #{tpu_custom_call.1} parent=5 // pred_check_branch
        %463 = sbr.rel (%p461) target = $region48
      $region47: #{tpu_custom_call.1} parent=5 // pred_region
        %s464 = ssub.s32 %s16, 2
        // Predicated region
        $region49: #{tpu_custom_call.1} parent=47 // pred_check
          %p465 = pneg %p129
        $region50: #{tpu_custom_call.1} parent=47 // pred_check_branch
          %467 = sbr.rel (%p465) target = $region52
        $region51: #{tpu_custom_call.1} parent=47 // pred_region
          %s468 = sand.u32 %s114, 1
          %s469 = scalar_lea.sflag [#allocation4], %s468
          %s470 = sand.u32 %s114, 1
          %s471 = smul.addr %s470, 32
          %s472 = scalar_lea.vmem [#allocation7], %s471
          %473 = dma.done %s469, 512
        $region52: #{tpu_custom_call.1} parent=47 // pred_fallthru
          _
      $region48: #{tpu_custom_call.1} parent=5 // pred_fallthru
        _
    $region6: #{tpu_custom_call.1} parent=1 // loop_footer
      %s20 = sadd.s32 1, %s16
    $region7: #{tpu_custom_call.1} parent=1 // loop_footer_branch
      %15 = sbr.rel target = $region3
    $region8: #{tpu_custom_call.1} parent=1 // loop_exit
      _
    %474 = vsyncpa [#allocation3], 1
    %s475 = scalar_lea.sflag [#allocation3], 1
    %476 = vsyncpa %s475, 1
    %477 = vsyncpa [#allocation6], 1
    %478 = vsyncpa [#allocation4], 1
    %s479 = scalar_lea.sflag [#allocation4], 1
    %480 = vsyncpa %s479, 1

</llo_original>
